<compile_context>
chip_gen: v6e
topology: v6e:2x2x1
jax: 0.10.0
libtpu: 0.0.40
codegen_flags: <defaults>
</compile_context>

<pallas_src>
import functools
import math

import jax
import jax.numpy as jnp
import numpy as np
from jax.experimental import pallas as pl
from jax.experimental.pallas import tpu as pltpu


# ------------------------- tiling helpers -------------------------

def _vmem_capacity_bytes():
    try:
        return int(pltpu.get_tpu_info().vmem_capacity_bytes)
    except Exception:
        return 64 << 20  # conservative fallback: v7x physical VMEM per TensorCore


def _pick_thw(HW, N, TC, itemsize, target_bytes):
    """Spatial tile: multiple of 128 that divides HW (or the full extent)."""
    if HW % 128 != 0:
        return HW                       # full extent: legal for any size
    budget = target_bytes // max(1, N * TC * itemsize)
    t = min((budget // 128) * 128, HW)
    if t < 128:
        t = 128
    while HW % t != 0:                  # keep it an exact divisor of HW
        t -= 128
    return t


def _pick_tiles(N, C, HW, itemsize, target_bytes):
    """Pick (TC, tHW): channel tile (divisor of C, <=128, sublane-packed
    multiple) and spatial tile (divisor of HW, multiple of 128)."""
    s = max(8, 32 // itemsize)  # sublane packing: 8 f32, 16 bf16, 32 int8/fp8
    tcs = sorted(
        [d for d in range(1, C + 1) if C % d == 0 and d <= 128 and d % s == 0],
        reverse=True,
    ) or [C]
    for tc in tcs:
        thw = _pick_thw(HW, N, tc, itemsize, target_bytes)
        if N * tc * thw * itemsize <= 2 * target_bytes:
            return tc, thw
    tc = tcs[-1]
    return tc, _pick_thw(HW, N, tc, itemsize, target_bytes)


def _pick_cs(thw, n, tc, itemsize, chunk_budget=512 << 10):
    """In-kernel HW chunk: a 128-multiple divisor of tHW whose (cs,N,TC)
    intermediate stays under ~chunk_budget bytes (never below 128)."""
    if thw % 128 != 0:
        return thw                      # whole block at once (small shapes)
    per128 = n * tc * 128 * itemsize
    cs = min(thw, max(1, chunk_budget // per128) * 128)
    while thw % cs != 0:                # terminates at cs=128 (thw % 128 == 0)
        cs -= 128
    return cs


def _plan(N, C, HW, itemsize):
    """Full tiling plan + generation-aware VMEM limit."""
    cap = _vmem_capacity_bytes()
    target = min(8 << 20, max(2 << 20, cap // 12))      # ~5 MiB v7x, ~8 MiB v5e/v6e
    TC, tHW = _pick_tiles(N, C, HW, itemsize, target)
    # Keep >=2 blocks so v7x's two TensorCores both get work on large arrays.
    while (C // TC) * (HW // tHW) < 2 and tHW % 256 == 0 and HW % (tHW // 2) == 0:
        tHW //= 2
    cs = _pick_cs(tHW, N, TC, itemsize)
    trips = tHW // cs
    block = N * TC * tHW * itemsize
    chunk = N * TC * cs * itemsize
    # 2 double-buffered blocks (in + out) + transpose intermediates + headroom,
    # clamped well under physical VMEM per generation.
    vmem_limit = int(min(int(cap * 0.85),
                         max(32 << 20, 4 * block + 4 * chunk + (8 << 20))))
    return TC, tHW, cs, trips, vmem_limit


# ------------------------- Pallas kernels -------------------------

def _nchw_to_chwn_kernel(x_ref, y_ref, *, n, cs, trips):
    """x_ref: (N, TC, tHW) tile of the NCHW buffer (lanes = HW: dense loads).
       y_ref: (TC, tHW*N) tile of the CHWN buffer (lanes = HW*N: dense stores)."""
    tc = x_ref.shape[1]

    def do_chunk(hw0, col0):
        xc = x_ref[:, :, pl.ds(hw0, cs)]                        # (N, TC, cs) aligned load
        w = jnp.transpose(xc, (2, 0, 1)).reshape(cs * n, tc)    # minor dim untouched
        y_ref[:, pl.ds(col0, cs * n)] = w.T                     # (TC, cs*N) aligned store

    if trips <= 8:
        for j in range(trips):                                  # short static unroll
            do_chunk(j * cs, j * (cs * n))
    else:
        def body(j, carry):                                     # bounded live ranges
            do_chunk(pl.multiple_of(j * cs, 128),
                     pl.multiple_of(j * (cs * n), 128))
            return carry
        jax.lax.fori_loop(0, trips, body, 0, unroll=2)


def _chwn_to_nchw_kernel(x_ref, y_ref, *, n, cs, trips):
    """x_ref: (TC, tHW*N) tile of the CHWN buffer (dense loads).
       y_ref: (N, TC, tHW) tile of the NCHW buffer (lanes = HW)."""
    tc = y_ref.shape[1]

    def do_chunk(col0, hw0):
        v = x_ref[:, pl.ds(col0, cs * n)]                       # (TC, cs*N) aligned load
        w = v.T.reshape(cs, n, tc)                              # minor dim untouched
        y_ref[:, :, pl.ds(hw0, cs)] = jnp.transpose(w, (1, 2, 0))  # (N, TC, cs) aligned store

    if trips <= 8:
        for j in range(trips):
            do_chunk(j * (cs * n), j * cs)
    else:
        def body(j, carry):
            do_chunk(pl.multiple_of(j * (cs * n), 128),
                     pl.multiple_of(j * cs, 128))
            return carry
        jax.lax.fori_loop(0, trips, body, 0, unroll=2)


# ------------------------- single-pass relayouts -------------------------

@jax.jit
def _relayout_nchw_to_chwn(x_nchw):
    """(N, C, H, W) NCHW buffer -> (C, H, W, N) CHWN buffer, one HBM pass."""
    N, C, H, W = x_nchw.shape
    HW = H * W
    dtype = x_nchw.dtype
    TC, tHW, cs, trips, vmem_limit = _plan(N, C, HW, dtype.itemsize)
    nbytes = N * C * HW * dtype.itemsize

    x3 = x_nchw.reshape(N, C, HW)                       # free row-major view
    y2 = pl.pallas_call(
        functools.partial(_nchw_to_chwn_kernel, n=N, cs=cs, trips=trips),
        out_shape=jax.ShapeDtypeStruct((C, HW * N), dtype),
        grid_spec=pltpu.PrefetchScalarGridSpec(
            num_scalar_prefetch=0,
            grid=(C // TC, HW // tHW),
            in_specs=[pl.BlockSpec((N, TC, tHW), lambda ci, hi: (0, ci, hi))],
            out_specs=pl.BlockSpec((TC, tHW * N), lambda ci, hi: (ci, hi)),
        ),
        compiler_params=pltpu.CompilerParams(
            dimension_semantics=("parallel", "parallel"),
            vmem_limit_bytes=vmem_limit,
        ),
        cost_estimate=pl.CostEstimate(flops=0, transcendentals=0,
                                      bytes_accessed=2 * nbytes),
    )(x3)
    return y2.reshape(C, H, W, N)                       # free row-major view


@jax.jit
def _relayout_chwn_to_nchw(x_chwn):
    """(C, H, W, N) CHWN buffer -> (N, C, H, W) NCHW buffer, one HBM pass."""
    C, H, W, N = x_chwn.shape
    HW = H * W
    dtype = x_chwn.dtype
    TC, tHW, cs, trips, vmem_limit = _plan(N, C, HW, dtype.itemsize)
    nbytes = N * C * HW * dtype.itemsize

    x2 = x_chwn.reshape(C, HW * N)                      # free row-major view
    y3 = pl.pallas_call(
        functools.partial(_chwn_to_nchw_kernel, n=N, cs=cs, trips=trips),
        out_shape=jax.ShapeDtypeStruct((N, C, HW), dtype),
        grid_spec=pltpu.PrefetchScalarGridSpec(
            num_scalar_prefetch=0,
            grid=(C // TC, HW // tHW),
            in_specs=[pl.BlockSpec((TC, tHW * N), lambda ci, hi: (ci, hi))],
            out_specs=pl.BlockSpec((N, TC, tHW), lambda ci, hi: (0, ci, hi)),
        ),
        compiler_params=pltpu.CompilerParams(
            dimension_semantics=("parallel", "parallel"),
            vmem_limit_bytes=vmem_limit,
        ),
        cost_estimate=pl.CostEstimate(flops=0, transcendentals=0,
                                      bytes_accessed=2 * nbytes),
    )(x2)
    return y3.reshape(N, C, H, W)


# ------------------------- module-level API -------------------------

def permute_forward(x, in_order, out_order):
    """Equivalent of _permute.forward.

    `x` is given in its `in_order` physical representation
    (NCHW -> (N,C,H,W), CHWN -> (C,H,W,N)); the result is returned in the
    `out_order` physical representation.  Logical values are preserved:
    out[c,h,w,n] == in[n,c,h,w] (and vice versa).
    """
    if in_order not in ("NCHW", "CHWN") or out_order not in ("NCHW", "CHWN"):
        raise ValueError(f"unsupported order pair {in_order}->{out_order}")
    if in_order == out_order:
        # Pure layout identity: nothing observable to do -> zero HBM traffic.
        return x
    if in_order == "NCHW":
        return _relayout_nchw_to_chwn(x)
    return _relayout_chwn_to_nchw(x)


class Permute:
    """JAX/Pallas analogue of torch_blocksparse.Permute (forward only)."""

    def __init__(self, in_order, out_order):
        assert in_order in ("NCHW", "CHWN") and out_order in ("NCHW", "CHWN")
        self.in_order = in_order
        self.out_order = out_order

    def __call__(self, x):
        return permute_forward(x, self.in_order, self.out_order)


# ------------------------- self-test -------------------------

if __name__ == "__main__":
    key = jax.random.PRNGKey(0)
    # Small NCHW-layout input: N=8, C=16, H=4, W=8.
    x = jax.random.normal(key, (8, 16, 4, 8), dtype=jnp.float32)

    to_chwn = Permute("NCHW", "CHWN")
    to_nchw = Permute("CHWN", "NCHW")

    # NCHW -> CHWN: result is the CHWN-physical buffer, i.e. a (C,H,W,N) array.
    y = jax.block_until_ready(to_chwn(x))
    assert y.shape == (16, 4, 8, 8) and y.dtype == x.dtype
    np.testing.assert_array_equal(np.asarray(y), np.transpose(np.asarray(x), (1, 2, 3, 0)))

    # CHWN -> NCHW: exact round trip back to the original buffer.
    z = jax.block_until_ready(to_nchw(y))
    assert z.shape == x.shape
    np.testing.assert_array_equal(np.asarray(z), np.asarray(x))

    # Identity layouts: no copy at all.
    same = jax.block_until_ready(Permute("NCHW", "NCHW")(x))
    np.testing.assert_array_equal(np.asarray(same), np.asarray(x))

    # A larger shape that exercises both grid axes and the chunked in-kernel loop.
    x2 = jax.random.normal(jax.random.PRNGKey(1), (8, 256, 64, 64), dtype=jnp.float32)
    y2 = jax.block_until_ready(to_chwn(x2))
    np.testing.assert_array_equal(np.asarray(y2), np.transpose(np.asarray(x2), (1, 2, 3, 0)))
    z2 = jax.block_until_ready(to_nchw(y2))
    np.testing.assert_array_equal(np.asarray(z2), np.asarray(x2))

    # bf16 (16-row sublane packing) round trip.
    x3 = jax.random.normal(jax.random.PRNGKey(2), (4, 32, 16, 8), dtype=jnp.bfloat16)
    y3 = jax.block_until_ready(to_chwn(x3))
    np.testing.assert_array_equal(np.asarray(y3), np.transpose(np.asarray(x3), (1, 2, 3, 0)))
    z3 = jax.block_until_ready(to_nchw(y3))
    np.testing.assert_array_equal(np.asarray(z3), np.asarray(x3))

    print("KERNEL_OK")
</pallas_src>

<mosaic_0001>
module attributes {stable_mosaic.version = 11 : i64} {
  func.func @_nchw_to_chwn_kernel(%arg0: i32, %arg1: i32, %arg2: memref<8x16x32xf32, #tpu.memory_space<vmem>>, %arg3: memref<16x256xf32, #tpu.memory_space<vmem>>) attributes {dimension_semantics = [#tpu.dimension_semantics<parallel>, #tpu.dimension_semantics<parallel>], iteration_bounds = array<i64: 1, 1>, scalar_prefetch = 0 : i64, scratch_operands = 0 : i64, tpu.core_type = #tpu.core_type<tc>, window_params = [{transform_indices = @transform_0, window_bounds = array<i64: 8, 16, 32>}, {transform_indices = @transform_1, window_bounds = array<i64: 16, 256>}]} {
    %c0 = arith.constant 0 : index
    %c0_0 = arith.constant 0 : index
    %c0_1 = arith.constant 0 : index
    %0 = vector.load %arg2[%c0, %c0_0, %c0_1] : memref<8x16x32xf32, #tpu.memory_space<vmem>>, vector<8x16x32xf32>
    %1 = tpu.transpose %0, [2, 0, 1] : vector<8x16x32xf32> -> vector<32x8x16xf32>
    %2 = vector.shape_cast %1 : vector<32x8x16xf32> to vector<256x16xf32>
    %3 = tpu.transpose %2, [1, 0] : vector<256x16xf32> -> vector<16x256xf32>
    %c0_2 = arith.constant 0 : index
    %c0_3 = arith.constant 0 : index
    %4 = vector.load %arg3[%c0_2, %c0_3] : memref<16x256xf32, #tpu.memory_space<vmem>>, vector<16x256xf32>
    tpu.vector_store %arg3[%c0_2, %c0_3], %3 {strides = array<i32>} : memref<16x256xf32, #tpu.memory_space<vmem>>, vector<16x256xf32>,
    return
  }
  func.func @transform_0(%arg0: i32, %arg1: i32) -> (i32, i32, i32) {
    %c0_i32 = arith.constant 0 : i32
    %c0_i32_0 = arith.constant 0 : i32
    return %c0_i32, %arg0, %arg1 : i32, i32, i32
  }
  func.func @transform_1(%arg0: i32, %arg1: i32) -> (i32, i32) {
    %c0_i32 = arith.constant 0 : i32
    return %arg0, %arg1 : i32, i32
  }
}

</mosaic_0001>

<llo_original>
// kernel: _relayout_nchw_to_chwn.1
$region0: #{_relayout_nchw_to_chwn.1}
  #allocation0 [shape = 'u32[]', space=smem, size = 0x4, offset = 0x4, fixed_abs, tag = 'smem constant byte address 0x4 - core index']
  #allocation1 [shape = 'u32[144,128]{1,0:T(1,128)}', space=vmem, size = 0x12000, scoped, tag = 'internal scratch']
  %s0 = inlined_call_operand.vmem [shape: f32[8,16,32], index: 0, kind: input, shape index: {}]
  %s1 = inlined_call_operand.vmem [shape: f32[16,256], index: 1, kind: output, shape index: {}]
  %s2 = sld [smem:[#allocation0]]
  $region14: #{_relayout_nchw_to_chwn.1} parent=0
    _
  %s4 = ssub.s32 1, %s2
  %s5 = scalar_select 0, %s4, %s2
  // Predicated region
  $region2: #{_relayout_nchw_to_chwn.1} parent=0 // pred_check
    _
  $region3: #{_relayout_nchw_to_chwn.1} parent=0 // pred_check_branch
    %7 = sbr.rel (0) target = $region5
  $region4: #{_relayout_nchw_to_chwn.1} parent=0 // pred_region
    _
  $region5: #{_relayout_nchw_to_chwn.1} parent=0 // pred_fallthru
    _
  %v8 = vld [vmem:[%s0] sm:$0xff]
  %v9 = vld [vmem:[%s0 + $0x8] sm:$0xff]
  %v10 = vld [vmem:[%s0 + $0x10] sm:$0xff]
  %v11 = vld [vmem:[%s0 + $0x18] sm:$0xff]
  %v12 = vld [vmem:[%s0 + $0x20] sm:$0xff]
  %v13 = vld [vmem:[%s0 + $0x28] sm:$0xff]
  %v14 = vld [vmem:[%s0 + $0x30] sm:$0xff]
  %v15 = vld [vmem:[%s0 + $0x38] sm:$0xff]
  %v16 = vld [vmem:[%s0 + $0x40] sm:$0xff]
  %v17 = vld [vmem:[%s0 + $0x48] sm:$0xff]
  %v18 = vld [vmem:[%s0 + $0x50] sm:$0xff]
  %v19 = vld [vmem:[%s0 + $0x58] sm:$0xff]
  %v20 = vld [vmem:[%s0 + $0x60] sm:$0xff]
  %v21 = vld [vmem:[%s0 + $0x68] sm:$0xff]
  %v22 = vld [vmem:[%s0 + $0x70] sm:$0xff]
  %v23 = vld [vmem:[%s0 + $0x78] sm:$0xff]
  %24 = vxpose.xlu0.b32.start [1/16] %v8, 128
  %25 = vxpose.xlu0.b32.cont [2/16] %v9, 128
  %26 = vxpose.xlu0.b32.cont [3/16] 0.0, 128
  %27 = vxpose.xlu0.b32.cont [4/16] 0.0, 128
  %28 = vxpose.xlu0.b32.cont [5/16] 0.0, 128
  %29 = vxpose.xlu0.b32.cont [6/16] 0.0, 128
  %30 = vxpose.xlu0.b32.cont [7/16] 0.0, 128
  %31 = vxpose.xlu0.b32.cont [8/16] 0.0, 128
  %32 = vxpose.xlu0.b32.cont [9/16] 0.0, 128
  %33 = vxpose.xlu0.b32.cont [10/16] 0.0, 128
  %34 = vxpose.xlu0.b32.cont [11/16] 0.0, 128
  %35 = vxpose.xlu0.b32.cont [12/16] 0.0, 128
  %36 = vxpose.xlu0.b32.cont [13/16] 0.0, 128
  %37 = vxpose.xlu0.b32.cont [14/16] 0.0, 128
  %38 = vxpose.xlu0.b32.cont [15/16] 0.0, 128
  %39 = vxpose.xlu0.b32.end [16/16] 0.0, 128
  %v40 = vpop.trf.xlu0
  %v41 = vpop.trf.xlu0
  %v42 = vpop.trf.xlu0
  %v43 = vpop.trf.xlu0
  %v44 = vpop.trf.xlu0
  %v45 = vpop.trf.xlu0
  %v46 = vpop.trf.xlu0
  %v47 = vpop.trf.xlu0
  %v48 = vpop.trf.xlu0
  %v49 = vpop.trf.xlu0
  %v50 = vpop.trf.xlu0
  %v51 = vpop.trf.xlu0
  %v52 = vpop.trf.xlu0
  %v53 = vpop.trf.xlu0
  %v54 = vpop.trf.xlu0
  %v55 = vpop.trf.xlu0
  %56 = vxpose.xlu0.b32.start [1/16] %v10, 128
  %57 = vxpose.xlu0.b32.cont [2/16] %v11, 128
  %58 = vxpose.xlu0.b32.cont [3/16] 0.0, 128
  %59 = vxpose.xlu0.b32.cont [4/16] 0.0, 128
  %60 = vxpose.xlu0.b32.cont [5/16] 0.0, 128
  %61 = vxpose.xlu0.b32.cont [6/16] 0.0, 128
  %62 = vxpose.xlu0.b32.cont [7/16] 0.0, 128
  %63 = vxpose.xlu0.b32.cont [8/16] 0.0, 128
  %64 = vxpose.xlu0.b32.cont [9/16] 0.0, 128
  %65 = vxpose.xlu0.b32.cont [10/16] 0.0, 128
  %66 = vxpose.xlu0.b32.cont [11/16] 0.0, 128
  %67 = vxpose.xlu0.b32.cont [12/16] 0.0, 128
  %68 = vxpose.xlu0.b32.cont [13/16] 0.0, 128
  %69 = vxpose.xlu0.b32.cont [14/16] 0.0, 128
  %70 = vxpose.xlu0.b32.cont [15/16] 0.0, 128
  %71 = vxpose.xlu0.b32.end [16/16] 0.0, 128
  %v72 = vpop.trf.xlu0
  %v73 = vpop.trf.xlu0
  %v74 = vpop.trf.xlu0
  %v75 = vpop.trf.xlu0
  %v76 = vpop.trf.xlu0
  %v77 = vpop.trf.xlu0
  %v78 = vpop.trf.xlu0
  %v79 = vpop.trf.xlu0
  %v80 = vpop.trf.xlu0
  %v81 = vpop.trf.xlu0
  %v82 = vpop.trf.xlu0
  %v83 = vpop.trf.xlu0
  %v84 = vpop.trf.xlu0
  %v85 = vpop.trf.xlu0
  %v86 = vpop.trf.xlu0
  %v87 = vpop.trf.xlu0
  %88 = vxpose.xlu0.b32.start [1/16] %v12, 128
  %89 = vxpose.xlu0.b32.cont [2/16] %v13, 128
  %90 = vxpose.xlu0.b32.cont [3/16] 0.0, 128
  %91 = vxpose.xlu0.b32.cont [4/16] 0.0, 128
  %92 = vxpose.xlu0.b32.cont [5/16] 0.0, 128
  %93 = vxpose.xlu0.b32.cont [6/16] 0.0, 128
  %94 = vxpose.xlu0.b32.cont [7/16] 0.0, 128
  %95 = vxpose.xlu0.b32.cont [8/16] 0.0, 128
  %96 = vxpose.xlu0.b32.cont [9/16] 0.0, 128
  %97 = vxpose.xlu0.b32.cont [10/16] 0.0, 128
  %98 = vxpose.xlu0.b32.cont [11/16] 0.0, 128
  %99 = vxpose.xlu0.b32.cont [12/16] 0.0, 128
  %100 = vxpose.xlu0.b32.cont [13/16] 0.0, 128
  %101 = vxpose.xlu0.b32.cont [14/16] 0.0, 128
  %102 = vxpose.xlu0.b32.cont [15/16] 0.0, 128
  %103 = vxpose.xlu0.b32.end [16/16] 0.0, 128
  %v104 = vpop.trf.xlu0
  %v105 = vpop.trf.xlu0
  %v106 = vpop.trf.xlu0
  %v107 = vpop.trf.xlu0
  %v108 = vpop.trf.xlu0
  %v109 = vpop.trf.xlu0
  %v110 = vpop.trf.xlu0
  %v111 = vpop.trf.xlu0
  %v112 = vpop.trf.xlu0
  %v113 = vpop.trf.xlu0
  %v114 = vpop.trf.xlu0
  %v115 = vpop.trf.xlu0
  %v116 = vpop.trf.xlu0
  %v117 = vpop.trf.xlu0
  %v118 = vpop.trf.xlu0
  %v119 = vpop.trf.xlu0
  %120 = vxpose.xlu0.b32.start [1/16] %v14, 128
  %121 = vxpose.xlu0.b32.cont [2/16] %v15, 128
  %122 = vxpose.xlu0.b32.cont [3/16] 0.0, 128
  %123 = vxpose.xlu0.b32.cont [4/16] 0.0, 128
  %124 = vxpose.xlu0.b32.cont [5/16] 0.0, 128
  %125 = vxpose.xlu0.b32.cont [6/16] 0.0, 128
  %126 = vxpose.xlu0.b32.cont [7/16] 0.0, 128
  %127 = vxpose.xlu0.b32.cont [8/16] 0.0, 128
  %128 = vxpose.xlu0.b32.cont [9/16] 0.0, 128
  %129 = vxpose.xlu0.b32.cont [10/16] 0.0, 128
  %130 = vxpose.xlu0.b32.cont [11/16] 0.0, 128
  %131 = vxpose.xlu0.b32.cont [12/16] 0.0, 128
  %132 = vxpose.xlu0.b32.cont [13/16] 0.0, 128
  %133 = vxpose.xlu0.b32.cont [14/16] 0.0, 128
  %134 = vxpose.xlu0.b32.cont [15/16] 0.0, 128
  %135 = vxpose.xlu0.b32.end [16/16] 0.0, 128
  %v136 = vpop.trf.xlu0
  %v137 = vpop.trf.xlu0
  %v138 = vpop.trf.xlu0
  %v139 = vpop.trf.xlu0
  %v140 = vpop.trf.xlu0
  %v141 = vpop.trf.xlu0
  %v142 = vpop.trf.xlu0
  %v143 = vpop.trf.xlu0
  %v144 = vpop.trf.xlu0
  %v145 = vpop.trf.xlu0
  %v146 = vpop.trf.xlu0
  %v147 = vpop.trf.xlu0
  %v148 = vpop.trf.xlu0
  %v149 = vpop.trf.xlu0
  %v150 = vpop.trf.xlu0
  %v151 = vpop.trf.xlu0
  %152 = vxpose.xlu0.b32.start [1/16] %v16, 128
  %153 = vxpose.xlu0.b32.cont [2/16] %v17, 128
  %154 = vxpose.xlu0.b32.cont [3/16] 0.0, 128
  %155 = vxpose.xlu0.b32.cont [4/16] 0.0, 128
  %156 = vxpose.xlu0.b32.cont [5/16] 0.0, 128
  %157 = vxpose.xlu0.b32.cont [6/16] 0.0, 128
  %158 = vxpose.xlu0.b32.cont [7/16] 0.0, 128
  %159 = vxpose.xlu0.b32.cont [8/16] 0.0, 128
  %160 = vxpose.xlu0.b32.cont [9/16] 0.0, 128
  %161 = vxpose.xlu0.b32.cont [10/16] 0.0, 128
  %162 = vxpose.xlu0.b32.cont [11/16] 0.0, 128
  %163 = vxpose.xlu0.b32.cont [12/16] 0.0, 128
  %164 = vxpose.xlu0.b32.cont [13/16] 0.0, 128
  %165 = vxpose.xlu0.b32.cont [14/16] 0.0, 128
  %166 = vxpose.xlu0.b32.cont [15/16] 0.0, 128
  %167 = vxpose.xlu0.b32.end [16/16] 0.0, 128
  %v168 = vpop.trf.xlu0
  %v169 = vpop.trf.xlu0
  %v170 = vpop.trf.xlu0
  %v171 = vpop.trf.xlu0
  %v172 = vpop.trf.xlu0
  %v173 = vpop.trf.xlu0
  %v174 = vpop.trf.xlu0
  %v175 = vpop.trf.xlu0
  %v176 = vpop.trf.xlu0
  %v177 = vpop.trf.xlu0
  %v178 = vpop.trf.xlu0
  %v179 = vpop.trf.xlu0
  %v180 = vpop.trf.xlu0
  %v181 = vpop.trf.xlu0
  %v182 = vpop.trf.xlu0
  %v183 = vpop.trf.xlu0
  %184 = vxpose.xlu0.b32.start [1/16] %v18, 128
  %185 = vxpose.xlu0.b32.cont [2/16] %v19, 128
  %186 = vxpose.xlu0.b32.cont [3/16] 0.0, 128
  %187 = vxpose.xlu0.b32.cont [4/16] 0.0, 128
  %188 = vxpose.xlu0.b32.cont [5/16] 0.0, 128
  %189 = vxpose.xlu0.b32.cont [6/16] 0.0, 128
  %190 = vxpose.xlu0.b32.cont [7/16] 0.0, 128
  %191 = vxpose.xlu0.b32.cont [8/16] 0.0, 128
  %192 = vxpose.xlu0.b32.cont [9/16] 0.0, 128
  %193 = vxpose.xlu0.b32.cont [10/16] 0.0, 128
  %194 = vxpose.xlu0.b32.cont [11/16] 0.0, 128
  %195 = vxpose.xlu0.b32.cont [12/16] 0.0, 128
  %196 = vxpose.xlu0.b32.cont [13/16] 0.0, 128
  %197 = vxpose.xlu0.b32.cont [14/16] 0.0, 128
  %198 = vxpose.xlu0.b32.cont [15/16] 0.0, 128
  %199 = vxpose.xlu0.b32.end [16/16] 0.0, 128
  %v200 = vpop.trf.xlu0
  %v201 = vpop.trf.xlu0
  %v202 = vpop.trf.xlu0
  %v203 = vpop.trf.xlu0
  %v204 = vpop.trf.xlu0
  %v205 = vpop.trf.xlu0
  %v206 = vpop.trf.xlu0
  %v207 = vpop.trf.xlu0
  %v208 = vpop.trf.xlu0
  %v209 = vpop.trf.xlu0
  %v210 = vpop.trf.xlu0
  %v211 = vpop.trf.xlu0
  %v212 = vpop.trf.xlu0
  %v213 = vpop.trf.xlu0
  %v214 = vpop.trf.xlu0
  %v215 = vpop.trf.xlu0
  %216 = vxpose.xlu0.b32.start [1/16] %v20, 128
  %217 = vxpose.xlu0.b32.cont [2/16] %v21, 128
  %218 = vxpose.xlu0.b32.cont [3/16] 0.0, 128
  %219 = vxpose.xlu0.b32.cont [4/16] 0.0, 128
  %220 = vxpose.xlu0.b32.cont [5/16] 0.0, 128
  %221 = vxpose.xlu0.b32.cont [6/16] 0.0, 128
  %222 = vxpose.xlu0.b32.cont [7/16] 0.0, 128
  %223 = vxpose.xlu0.b32.cont [8/16] 0.0, 128
  %224 = vxpose.xlu0.b32.cont [9/16] 0.0, 128
  %225 = vxpose.xlu0.b32.cont [10/16] 0.0, 128
  %226 = vxpose.xlu0.b32.cont [11/16] 0.0, 128
  %227 = vxpose.xlu0.b32.cont [12/16] 0.0, 128
  %228 = vxpose.xlu0.b32.cont [13/16] 0.0, 128
  %229 = vxpose.xlu0.b32.cont [14/16] 0.0, 128
  %230 = vxpose.xlu0.b32.cont [15/16] 0.0, 128
  %231 = vxpose.xlu0.b32.end [16/16] 0.0, 128
  %v232 = vpop.trf.xlu0
  %v233 = vpop.trf.xlu0
  %v234 = vpop.trf.xlu0
  %v235 = vpop.trf.xlu0
  %v236 = vpop.trf.xlu0
  %v237 = vpop.trf.xlu0
  %v238 = vpop.trf.xlu0
  %v239 = vpop.trf.xlu0
  %v240 = vpop.trf.xlu0
  %v241 = vpop.trf.xlu0
  %v242 = vpop.trf.xlu0
  %v243 = vpop.trf.xlu0
  %v244 = vpop.trf.xlu0
  %v245 = vpop.trf.xlu0
  %v246 = vpop.trf.xlu0
  %v247 = vpop.trf.xlu0
  %248 = vxpose.xlu0.b32.start [1/16] %v22, 128
  %249 = vxpose.xlu0.b32.cont [2/16] %v23, 128
  %250 = vxpose.xlu0.b32.cont [3/16] 0.0, 128
  %251 = vxpose.xlu0.b32.cont [4/16] 0.0, 128
  %252 = vxpose.xlu0.b32.cont [5/16] 0.0, 128
  %253 = vxpose.xlu0.b32.cont [6/16] 0.0, 128
  %254 = vxpose.xlu0.b32.cont [7/16] 0.0, 128
  %255 = vxpose.xlu0.b32.cont [8/16] 0.0, 128
  %256 = vxpose.xlu0.b32.cont [9/16] 0.0, 128
  %257 = vxpose.xlu0.b32.cont [10/16] 0.0, 128
  %258 = vxpose.xlu0.b32.cont [11/16] 0.0, 128
  %259 = vxpose.xlu0.b32.cont [12/16] 0.0, 128
  %260 = vxpose.xlu0.b32.cont [13/16] 0.0, 128
  %261 = vxpose.xlu0.b32.cont [14/16] 0.0, 128
  %262 = vxpose.xlu0.b32.cont [15/16] 0.0, 128
  %263 = vxpose.xlu0.b32.end [16/16] 0.0, 128
  %v264 = vpop.trf.xlu0
  %v265 = vpop.trf.xlu0
  %v266 = vpop.trf.xlu0
  %v267 = vpop.trf.xlu0
  %v268 = vpop.trf.xlu0
  %v269 = vpop.trf.xlu0
  %v270 = vpop.trf.xlu0
  %v271 = vpop.trf.xlu0
  %v272 = vpop.trf.xlu0
  %v273 = vpop.trf.xlu0
  %v274 = vpop.trf.xlu0
  %v275 = vpop.trf.xlu0
  %v276 = vpop.trf.xlu0
  %v277 = vpop.trf.xlu0
  %v278 = vpop.trf.xlu0
  %v279 = vpop.trf.xlu0
  %v280 = vcombine.low %v40, %v104
  %v281 = vcombine.high %v40, %v104
  %v283 = vunpack.c.l.s4 1983009808
  %v284 = vunpack.c.0.s8 %v283
  %v285 = vlaneseq
  %v286 = vshrl.u32 %v285, 7
  %v287 = vsub.s32 %v284, %v286
  %v288 = vrot.slane %v280, %v287
  %v290 = vunpack.c.l.s4 1983009808
  %v291 = vunpack.c.0.s8 %v290
  %v292 = vlaneseq
  %v293 = vshrl.u32 %v292, 7
  %v294 = vsub.s32 %v291, %v293
  %v295 = vrot.slane %v281, %v294
  %v296 = vcombine.low %v72, %v136
  %v297 = vcombine.high %v72, %v136
  %v299 = vunpack.c.l.s4 1983009808
  %v300 = vunpack.c.0.s8 %v299
  %v301 = vlaneseq
  %v302 = vshrl.u32 %v301, 7
  %v303 = vsub.s32 %v300, %v302
  %v304 = vrot.slane %v296, %v303
  %v306 = vunpack.c.l.s4 1983009808
  %v307 = vunpack.c.0.s8 %v306
  %v308 = vlaneseq
  %v309 = vshrl.u32 %v308, 7
  %v310 = vsub.s32 %v307, %v309
  %v311 = vrot.slane %v297, %v310
  %v312 = vcombine.low %v168, %v232
  %v313 = vcombine.high %v168, %v232
  %v315 = vunpack.c.l.s4 1983009808
  %v316 = vunpack.c.0.s8 %v315
  %v317 = vlaneseq
  %v318 = vshrl.u32 %v317, 7
  %v319 = vsub.s32 %v316, %v318
  %v320 = vrot.slane %v312, %v319
  %v322 = vunpack.c.l.s4 1983009808
  %v323 = vunpack.c.0.s8 %v322
  %v324 = vlaneseq
  %v325 = vshrl.u32 %v324, 7
  %v326 = vsub.s32 %v323, %v325
  %v327 = vrot.slane %v313, %v326
  %v328 = vcombine.low %v200, %v264
  %v329 = vcombine.high %v200, %v264
  %v331 = vunpack.c.l.s4 1983009808
  %v332 = vunpack.c.0.s8 %v331
  %v333 = vlaneseq
  %v334 = vshrl.u32 %v333, 7
  %v335 = vsub.s32 %v332, %v334
  %v336 = vrot.slane %v328, %v335
  %v338 = vunpack.c.l.s4 1983009808
  %v339 = vunpack.c.0.s8 %v338
  %v340 = vlaneseq
  %v341 = vshrl.u32 %v340, 7
  %v342 = vsub.s32 %v339, %v341
  %v343 = vrot.slane %v329, %v342
  %v344 = vcombine.low %v288, %v304
  %v345 = vcombine.high %v288, %v304
  %v347 = vunpack.c.l.s4 1934713408
  %v348 = vunpack.c.0.s8 %v347
  %v349 = vlaneseq
  %v350 = vshrl.u32 %v349, 7
  %v351 = vsub.s32 %v348, %v350
  %v352 = vrot.slane %v344, %v351
  %v354 = vunpack.c.l.s4 1934713408
  %v355 = vunpack.c.0.s8 %v354
  %v356 = vlaneseq
  %v357 = vshrl.u32 %v356, 7
  %v358 = vsub.s32 %v355, %v357
  %v359 = vrot.slane %v345, %v358
  %v360 = vcombine.low %v295, %v311
  %v361 = vcombine.high %v295, %v311
  %v363 = vunpack.c.l.s4 1934713408
  %v364 = vunpack.c.0.s8 %v363
  %v365 = vlaneseq
  %v366 = vshrl.u32 %v365, 7
  %v367 = vsub.s32 %v364, %v366
  %v368 = vrot.slane %v360, %v367
  %v370 = vunpack.c.l.s4 1934713408
  %v371 = vunpack.c.0.s8 %v370
  %v372 = vlaneseq
  %v373 = vshrl.u32 %v372, 7
  %v374 = vsub.s32 %v371, %v373
  %v375 = vrot.slane %v361, %v374
  %v376 = vcombine.low %v320, %v336
  %v377 = vcombine.high %v320, %v336
  %v379 = vunpack.c.l.s4 1934713408
  %v380 = vunpack.c.0.s8 %v379
  %v381 = vlaneseq
  %v382 = vshrl.u32 %v381, 7
  %v383 = vsub.s32 %v380, %v382
  %v384 = vrot.slane %v376, %v383
  %v386 = vunpack.c.l.s4 1934713408
  %v387 = vunpack.c.0.s8 %v386
  %v388 = vlaneseq
  %v389 = vshrl.u32 %v388, 7
  %v390 = vsub.s32 %v387, %v389
  %v391 = vrot.slane %v377, %v390
  %v392 = vcombine.low %v327, %v343
  %v393 = vcombine.high %v327, %v343
  %v395 = vunpack.c.l.s4 1934713408
  %v396 = vunpack.c.0.s8 %v395
  %v397 = vlaneseq
  %v398 = vshrl.u32 %v397, 7
  %v399 = vsub.s32 %v396, %v398
  %v400 = vrot.slane %v392, %v399
  %v402 = vunpack.c.l.s4 1934713408
  %v403 = vunpack.c.0.s8 %v402
  %v404 = vlaneseq
  %v405 = vshrl.u32 %v404, 7
  %v406 = vsub.s32 %v403, %v405
  %v407 = vrot.slane %v393, %v406
  %v408 = vcombine.low %v352, %v384
  %v409 = vcombine.high %v352, %v384
  %v410 = vcombine.low %v359, %v391
  %v411 = vcombine.high %v359, %v391
  %v412 = vcombine.low %v368, %v400
  %v413 = vcombine.high %v368, %v400
  %v414 = vcombine.low %v375, %v407
  %v415 = vcombine.high %v375, %v407
  %v416 = vcombine.low %v41, %v105
  %v417 = vcombine.high %v41, %v105
  %v419 = vunpack.c.l.s4 1983009808
  %v420 = vunpack.c.0.s8 %v419
  %v421 = vlaneseq
  %v422 = vshrl.u32 %v421, 7
  %v423 = vsub.s32 %v420, %v422
  %v424 = vrot.slane %v416, %v423
  %v426 = vunpack.c.l.s4 1983009808
  %v427 = vunpack.c.0.s8 %v426
  %v428 = vlaneseq
  %v429 = vshrl.u32 %v428, 7
  %v430 = vsub.s32 %v427, %v429
  %v431 = vrot.slane %v417, %v430
  %v432 = vcombine.low %v73, %v137
  %v433 = vcombine.high %v73, %v137
  %v435 = vunpack.c.l.s4 1983009808
  %v436 = vunpack.c.0.s8 %v435
  %v437 = vlaneseq
  %v438 = vshrl.u32 %v437, 7
  %v439 = vsub.s32 %v436, %v438
  %v440 = vrot.slane %v432, %v439
  %v442 = vunpack.c.l.s4 1983009808
  %v443 = vunpack.c.0.s8 %v442
  %v444 = vlaneseq
  %v445 = vshrl.u32 %v444, 7
  %v446 = vsub.s32 %v443, %v445
  %v447 = vrot.slane %v433, %v446
  %v448 = vcombine.low %v169, %v233
  %v449 = vcombine.high %v169, %v233
  %v451 = vunpack.c.l.s4 1983009808
  %v452 = vunpack.c.0.s8 %v451
  %v453 = vlaneseq
  %v454 = vshrl.u32 %v453, 7
  %v455 = vsub.s32 %v452, %v454
  %v456 = vrot.slane %v448, %v455
  %v458 = vunpack.c.l.s4 1983009808
  %v459 = vunpack.c.0.s8 %v458
  %v460 = vlaneseq
  %v461 = vshrl.u32 %v460, 7
  %v462 = vsub.s32 %v459, %v461
  %v463 = vrot.slane %v449, %v462
  %v464 = vcombine.low %v201, %v265
  %v465 = vcombine.high %v201, %v265
  %v467 = vunpack.c.l.s4 1983009808
  %v468 = vunpack.c.0.s8 %v467
  %v469 = vlaneseq
  %v470 = vshrl.u32 %v469, 7
  %v471 = vsub.s32 %v468, %v470
  %v472 = vrot.slane %v464, %v471
  %v474 = vunpack.c.l.s4 1983009808
  %v475 = vunpack.c.0.s8 %v474
  %v476 = vlaneseq
  %v477 = vshrl.u32 %v476, 7
  %v478 = vsub.s32 %v475, %v477
  %v479 = vrot.slane %v465, %v478
  %v480 = vcombine.low %v424, %v440
  %v481 = vcombine.high %v424, %v440
  %v483 = vunpack.c.l.s4 1934713408
  %v484 = vunpack.c.0.s8 %v483
  %v485 = vlaneseq
  %v486 = vshrl.u32 %v485, 7
  %v487 = vsub.s32 %v484, %v486
  %v488 = vrot.slane %v480, %v487
  %v490 = vunpack.c.l.s4 1934713408
  %v491 = vunpack.c.0.s8 %v490
  %v492 = vlaneseq
  %v493 = vshrl.u32 %v492, 7
  %v494 = vsub.s32 %v491, %v493
  %v495 = vrot.slane %v481, %v494
  %v496 = vcombine.low %v431, %v447
  %v497 = vcombine.high %v431, %v447
  %v499 = vunpack.c.l.s4 1934713408
  %v500 = vunpack.c.0.s8 %v499
  %v501 = vlaneseq
  %v502 = vshrl.u32 %v501, 7
  %v503 = vsub.s32 %v500, %v502
  %v504 = vrot.slane %v496, %v503
  %v506 = vunpack.c.l.s4 1934713408
  %v507 = vunpack.c.0.s8 %v506
  %v508 = vlaneseq
  %v509 = vshrl.u32 %v508, 7
  %v510 = vsub.s32 %v507, %v509
  %v511 = vrot.slane %v497, %v510
  %v512 = vcombine.low %v456, %v472
  %v513 = vcombine.high %v456, %v472
  %v515 = vunpack.c.l.s4 1934713408
  %v516 = vunpack.c.0.s8 %v515
  %v517 = vlaneseq
  %v518 = vshrl.u32 %v517, 7
  %v519 = vsub.s32 %v516, %v518
  %v520 = vrot.slane %v512, %v519
  %v522 = vunpack.c.l.s4 1934713408
  %v523 = vunpack.c.0.s8 %v522
  %v524 = vlaneseq
  %v525 = vshrl.u32 %v524, 7
  %v526 = vsub.s32 %v523, %v525
  %v527 = vrot.slane %v513, %v526
  %v528 = vcombine.low %v463, %v479
  %v529 = vcombine.high %v463, %v479
  %v531 = vunpack.c.l.s4 1934713408
  %v532 = vunpack.c.0.s8 %v531
  %v533 = vlaneseq
  %v534 = vshrl.u32 %v533, 7
  %v535 = vsub.s32 %v532, %v534
  %v536 = vrot.slane %v528, %v535
  %v538 = vunpack.c.l.s4 1934713408
  %v539 = vunpack.c.0.s8 %v538
  %v540 = vlaneseq
  %v541 = vshrl.u32 %v540, 7
  %v542 = vsub.s32 %v539, %v541
  %v543 = vrot.slane %v529, %v542
  %v544 = vcombine.low %v488, %v520
  %v545 = vcombine.high %v488, %v520
  %v546 = vcombine.low %v495, %v527
  %v547 = vcombine.high %v495, %v527
  %v548 = vcombine.low %v504, %v536
  %v549 = vcombine.high %v504, %v536
  %v550 = vcombine.low %v511, %v543
  %v551 = vcombine.high %v511, %v543
  %v552 = vcombine.low %v42, %v106
  %v553 = vcombine.high %v42, %v106
  %v555 = vunpack.c.l.s4 1983009808
  %v556 = vunpack.c.0.s8 %v555
  %v557 = vlaneseq
  %v558 = vshrl.u32 %v557, 7
  %v559 = vsub.s32 %v556, %v558
  %v560 = vrot.slane %v552, %v559
  %v562 = vunpack.c.l.s4 1983009808
  %v563 = vunpack.c.0.s8 %v562
  %v564 = vlaneseq
  %v565 = vshrl.u32 %v564, 7
  %v566 = vsub.s32 %v563, %v565
  %v567 = vrot.slane %v553, %v566
  %v568 = vcombine.low %v74, %v138
  %v569 = vcombine.high %v74, %v138
  %v571 = vunpack.c.l.s4 1983009808
  %v572 = vunpack.c.0.s8 %v571
  %v573 = vlaneseq
  %v574 = vshrl.u32 %v573, 7
  %v575 = vsub.s32 %v572, %v574
  %v576 = vrot.slane %v568, %v575
  %v578 = vunpack.c.l.s4 1983009808
  %v579 = vunpack.c.0.s8 %v578
  %v580 = vlaneseq
  %v581 = vshrl.u32 %v580, 7
  %v582 = vsub.s32 %v579, %v581
  %v583 = vrot.slane %v569, %v582
  %v584 = vcombine.low %v170, %v234
  %v585 = vcombine.high %v170, %v234
  %v587 = vunpack.c.l.s4 1983009808
  %v588 = vunpack.c.0.s8 %v587
  %v589 = vlaneseq
  %v590 = vshrl.u32 %v589, 7
  %v591 = vsub.s32 %v588, %v590
  %v592 = vrot.slane %v584, %v591
  %v594 = vunpack.c.l.s4 1983009808
  %v595 = vunpack.c.0.s8 %v594
  %v596 = vlaneseq
  %v597 = vshrl.u32 %v596, 7
  %v598 = vsub.s32 %v595, %v597
  %v599 = vrot.slane %v585, %v598
  %v600 = vcombine.low %v202, %v266
  %v601 = vcombine.high %v202, %v266
  %v603 = vunpack.c.l.s4 1983009808
  %v604 = vunpack.c.0.s8 %v603
  %v605 = vlaneseq
  %v606 = vshrl.u32 %v605, 7
  %v607 = vsub.s32 %v604, %v606
  %v608 = vrot.slane %v600, %v607
  %v610 = vunpack.c.l.s4 1983009808
  %v611 = vunpack.c.0.s8 %v610
  %v612 = vlaneseq
  %v613 = vshrl.u32 %v612, 7
  %v614 = vsub.s32 %v611, %v613
  %v615 = vrot.slane %v601, %v614
  %v616 = vcombine.low %v560, %v576
  %v617 = vcombine.high %v560, %v576
  %v619 = vunpack.c.l.s4 1934713408
  %v620 = vunpack.c.0.s8 %v619
  %v621 = vlaneseq
  %v622 = vshrl.u32 %v621, 7
  %v623 = vsub.s32 %v620, %v622
  %v624 = vrot.slane %v616, %v623
  %v626 = vunpack.c.l.s4 1934713408
  %v627 = vunpack.c.0.s8 %v626
  %v628 = vlaneseq
  %v629 = vshrl.u32 %v628, 7
  %v630 = vsub.s32 %v627, %v629
  %v631 = vrot.slane %v617, %v630
  %v632 = vcombine.low %v567, %v583
  %v633 = vcombine.high %v567, %v583
  %v635 = vunpack.c.l.s4 1934713408
  %v636 = vunpack.c.0.s8 %v635
  %v637 = vlaneseq
  %v638 = vshrl.u32 %v637, 7
  %v639 = vsub.s32 %v636, %v638
  %v640 = vrot.slane %v632, %v639
  %v642 = vunpack.c.l.s4 1934713408
  %v643 = vunpack.c.0.s8 %v642
  %v644 = vlaneseq
  %v645 = vshrl.u32 %v644, 7
  %v646 = vsub.s32 %v643, %v645
  %v647 = vrot.slane %v633, %v646
  %v648 = vcombine.low %v592, %v608
  %v649 = vcombine.high %v592, %v608
  %v651 = vunpack.c.l.s4 1934713408
  %v652 = vunpack.c.0.s8 %v651
  %v653 = vlaneseq
  %v654 = vshrl.u32 %v653, 7
  %v655 = vsub.s32 %v652, %v654
  %v656 = vrot.slane %v648, %v655
  %v658 = vunpack.c.l.s4 1934713408
  %v659 = vunpack.c.0.s8 %v658
  %v660 = vlaneseq
  %v661 = vshrl.u32 %v660, 7
  %v662 = vsub.s32 %v659, %v661
  %v663 = vrot.slane %v649, %v662
  %v664 = vcombine.low %v599, %v615
  %v665 = vcombine.high %v599, %v615
  %v667 = vunpack.c.l.s4 1934713408
  %v668 = vunpack.c.0.s8 %v667
  %v669 = vlaneseq
  %v670 = vshrl.u32 %v669, 7
  %v671 = vsub.s32 %v668, %v670
  %v672 = vrot.slane %v664, %v671
  %v674 = vunpack.c.l.s4 1934713408
  %v675 = vunpack.c.0.s8 %v674
  %v676 = vlaneseq
  %v677 = vshrl.u32 %v676, 7
  %v678 = vsub.s32 %v675, %v677
  %v679 = vrot.slane %v665, %v678
  %v680 = vcombine.low %v624, %v656
  %v681 = vcombine.high %v624, %v656
  %v682 = vcombine.low %v631, %v663
  %v683 = vcombine.high %v631, %v663
  %v684 = vcombine.low %v640, %v672
  %v685 = vcombine.high %v640, %v672
  %v686 = vcombine.low %v647, %v679
  %v687 = vcombine.high %v647, %v679
  %v688 = vcombine.low %v43, %v107
  %v689 = vcombine.high %v43, %v107
  %v691 = vunpack.c.l.s4 1983009808
  %v692 = vunpack.c.0.s8 %v691
  %v693 = vlaneseq
  %v694 = vshrl.u32 %v693, 7
  %v695 = vsub.s32 %v692, %v694
  %v696 = vrot.slane %v688, %v695
  %v698 = vunpack.c.l.s4 1983009808
  %v699 = vunpack.c.0.s8 %v698
  %v700 = vlaneseq
  %v701 = vshrl.u32 %v700, 7
  %v702 = vsub.s32 %v699, %v701
  %v703 = vrot.slane %v689, %v702
  %v704 = vcombine.low %v75, %v139
  %v705 = vcombine.high %v75, %v139
  %v707 = vunpack.c.l.s4 1983009808
  %v708 = vunpack.c.0.s8 %v707
  %v709 = vlaneseq
  %v710 = vshrl.u32 %v709, 7
  %v711 = vsub.s32 %v708, %v710
  %v712 = vrot.slane %v704, %v711
  %v714 = vunpack.c.l.s4 1983009808
  %v715 = vunpack.c.0.s8 %v714
  %v716 = vlaneseq
  %v717 = vshrl.u32 %v716, 7
  %v718 = vsub.s32 %v715, %v717
  %v719 = vrot.slane %v705, %v718
  %v720 = vcombine.low %v171, %v235
  %v721 = vcombine.high %v171, %v235
  %v723 = vunpack.c.l.s4 1983009808
  %v724 = vunpack.c.0.s8 %v723
  %v725 = vlaneseq
  %v726 = vshrl.u32 %v725, 7
  %v727 = vsub.s32 %v724, %v726
  %v728 = vrot.slane %v720, %v727
  %v730 = vunpack.c.l.s4 1983009808
  %v731 = vunpack.c.0.s8 %v730
  %v732 = vlaneseq
  %v733 = vshrl.u32 %v732, 7
  %v734 = vsub.s32 %v731, %v733
  %v735 = vrot.slane %v721, %v734
  %v736 = vcombine.low %v203, %v267
  %v737 = vcombine.high %v203, %v267
  %v739 = vunpack.c.l.s4 1983009808
  %v740 = vunpack.c.0.s8 %v739
  %v741 = vlaneseq
  %v742 = vshrl.u32 %v741, 7
  %v743 = vsub.s32 %v740, %v742
  %v744 = vrot.slane %v736, %v743
  %v746 = vunpack.c.l.s4 1983009808
  %v747 = vunpack.c.0.s8 %v746
  %v748 = vlaneseq
  %v749 = vshrl.u32 %v748, 7
  %v750 = vsub.s32 %v747, %v749
  %v751 = vrot.slane %v737, %v750
  %v752 = vcombine.low %v696, %v712
  %v753 = vcombine.high %v696, %v712
  %v755 = vunpack.c.l.s4 1934713408
  %v756 = vunpack.c.0.s8 %v755
  %v757 = vlaneseq
  %v758 = vshrl.u32 %v757, 7
  %v759 = vsub.s32 %v756, %v758
  %v760 = vrot.slane %v752, %v759
  %v762 = vunpack.c.l.s4 1934713408
  %v763 = vunpack.c.0.s8 %v762
  %v764 = vlaneseq
  %v765 = vshrl.u32 %v764, 7
  %v766 = vsub.s32 %v763, %v765
  %v767 = vrot.slane %v753, %v766
  %v768 = vcombine.low %v703, %v719
  %v769 = vcombine.high %v703, %v719
  %v771 = vunpack.c.l.s4 1934713408
  %v772 = vunpack.c.0.s8 %v771
  %v773 = vlaneseq
  %v774 = vshrl.u32 %v773, 7
  %v775 = vsub.s32 %v772, %v774
  %v776 = vrot.slane %v768, %v775
  %v778 = vunpack.c.l.s4 1934713408
  %v779 = vunpack.c.0.s8 %v778
  %v780 = vlaneseq
  %v781 = vshrl.u32 %v780, 7
  %v782 = vsub.s32 %v779, %v781
  %v783 = vrot.slane %v769, %v782
  %v784 = vcombine.low %v728, %v744
  %v785 = vcombine.high %v728, %v744
  %v787 = vunpack.c.l.s4 1934713408
  %v788 = vunpack.c.0.s8 %v787
  %v789 = vlaneseq
  %v790 = vshrl.u32 %v789, 7
  %v791 = vsub.s32 %v788, %v790
  %v792 = vrot.slane %v784, %v791
  %v794 = vunpack.c.l.s4 1934713408
  %v795 = vunpack.c.0.s8 %v794
  %v796 = vlaneseq
  %v797 = vshrl.u32 %v796, 7
  %v798 = vsub.s32 %v795, %v797
  %v799 = vrot.slane %v785, %v798
  %v800 = vcombine.low %v735, %v751
  %v801 = vcombine.high %v735, %v751
  %v803 = vunpack.c.l.s4 1934713408
  %v804 = vunpack.c.0.s8 %v803
  %v805 = vlaneseq
  %v806 = vshrl.u32 %v805, 7
  %v807 = vsub.s32 %v804, %v806
  %v808 = vrot.slane %v800, %v807
  %v810 = vunpack.c.l.s4 1934713408
  %v811 = vunpack.c.0.s8 %v810
  %v812 = vlaneseq
  %v813 = vshrl.u32 %v812, 7
  %v814 = vsub.s32 %v811, %v813
  %v815 = vrot.slane %v801, %v814
  %v816 = vcombine.low %v760, %v792
  %v817 = vcombine.high %v760, %v792
  %v818 = vcombine.low %v767, %v799
  %v819 = vcombine.high %v767, %v799
  %v820 = vcombine.low %v776, %v808
  %v821 = vcombine.high %v776, %v808
  %v822 = vcombine.low %v783, %v815
  %v823 = vcombine.high %v783, %v815
  %824 = vxpose.xlu0.b32.start [1/16] %v408, 128
  %825 = vxpose.xlu0.b32.cont [2/16] %v409, 128
  %826 = vxpose.xlu0.b32.cont [3/16] %v410, 128
  %827 = vxpose.xlu0.b32.cont [4/16] %v411, 128
  %828 = vxpose.xlu0.b32.cont [5/16] %v412, 128
  %829 = vxpose.xlu0.b32.cont [6/16] %v413, 128
  %830 = vxpose.xlu0.b32.cont [7/16] %v414, 128
  %831 = vxpose.xlu0.b32.cont [8/16] %v415, 128
  %832 = vxpose.xlu0.b32.cont [9/16] %v544, 128
  %833 = vxpose.xlu0.b32.cont [10/16] %v545, 128
  %834 = vxpose.xlu0.b32.cont [11/16] %v546, 128
  %835 = vxpose.xlu0.b32.cont [12/16] %v547, 128
  %836 = vxpose.xlu0.b32.cont [13/16] %v548, 128
  %837 = vxpose.xlu0.b32.cont [14/16] %v549, 128
  %838 = vxpose.xlu0.b32.cont [15/16] %v550, 128
  %839 = vxpose.xlu0.b32.end [16/16] %v551, 128
  %v840 = vpop.trf.xlu0
  %v841 = vpop.trf.xlu0
  %v842 = vpop.trf.xlu0
  %v843 = vpop.trf.xlu0
  %v844 = vpop.trf.xlu0
  %v845 = vpop.trf.xlu0
  %v846 = vpop.trf.xlu0
  %v847 = vpop.trf.xlu0
  %v848 = vpop.trf.xlu0
  %v849 = vpop.trf.xlu0
  %v850 = vpop.trf.xlu0
  %v851 = vpop.trf.xlu0
  %v852 = vpop.trf.xlu0
  %v853 = vpop.trf.xlu0
  %v854 = vpop.trf.xlu0
  %v855 = vpop.trf.xlu0
  %856 = vxpose.xlu0.b32.start [1/16] %v680, 128
  %857 = vxpose.xlu0.b32.cont [2/16] %v681, 128
  %858 = vxpose.xlu0.b32.cont [3/16] %v682, 128
  %859 = vxpose.xlu0.b32.cont [4/16] %v683, 128
  %860 = vxpose.xlu0.b32.cont [5/16] %v684, 128
  %861 = vxpose.xlu0.b32.cont [6/16] %v685, 128
  %862 = vxpose.xlu0.b32.cont [7/16] %v686, 128
  %863 = vxpose.xlu0.b32.cont [8/16] %v687, 128
  %864 = vxpose.xlu0.b32.cont [9/16] %v816, 128
  %865 = vxpose.xlu0.b32.cont [10/16] %v817, 128
  %866 = vxpose.xlu0.b32.cont [11/16] %v818, 128
  %867 = vxpose.xlu0.b32.cont [12/16] %v819, 128
  %868 = vxpose.xlu0.b32.cont [13/16] %v820, 128
  %869 = vxpose.xlu0.b32.cont [14/16] %v821, 128
  %870 = vxpose.xlu0.b32.cont [15/16] %v822, 128
  %871 = vxpose.xlu0.b32.end [16/16] %v823, 128
  %v872 = vpop.trf.xlu0
  %v873 = vpop.trf.xlu0
  %v874 = vpop.trf.xlu0
  %v875 = vpop.trf.xlu0
  %v876 = vpop.trf.xlu0
  %v877 = vpop.trf.xlu0
  %v878 = vpop.trf.xlu0
  %v879 = vpop.trf.xlu0
  %v880 = vpop.trf.xlu0
  %v881 = vpop.trf.xlu0
  %v882 = vpop.trf.xlu0
  %v883 = vpop.trf.xlu0
  %v884 = vpop.trf.xlu0
  %v885 = vpop.trf.xlu0
  %v886 = vpop.trf.xlu0
  %v887 = vpop.trf.xlu0
  %888 = vst [vmem:[%s1] sm:$0xff] %v840
  %889 = vst [vmem:[%s1 + $0x8] sm:$0xff] %v872
  %890 = vst [vmem:[%s1 + $0x10] sm:$0xff] %v841
  %891 = vst [vmem:[%s1 + $0x18] sm:$0xff] %v873
  // Predicated region
  $region6: #{_relayout_nchw_to_chwn.1} parent=0 // pred_check
    _
  $region7: #{_relayout_nchw_to_chwn.1} parent=0 // pred_check_branch
    %893 = sbr.rel (0) target = $region9
  $region8: #{_relayout_nchw_to_chwn.1} parent=0 // pred_region
    _
  $region9: #{_relayout_nchw_to_chwn.1} parent=0 // pred_fallthru
    _
  // Predicated region
  $region10: #{_relayout_nchw_to_chwn.1} parent=0 // pred_check
    _
  $region11: #{_relayout_nchw_to_chwn.1} parent=0 // pred_check_branch
    %895 = sbr.rel (0) target = $region13
  $region12: #{_relayout_nchw_to_chwn.1} parent=0 // pred_region
    _
  $region13: #{_relayout_nchw_to_chwn.1} parent=0 // pred_fallthru
    _

</llo_original>
